<compile_context>
chip_gen: v7x
topology: tpu7x:2x2x1
jax: 0.10.0
libtpu: 0.0.40
codegen_flags: <defaults>
</compile_context>

<pallas_src>
import functools

import jax
import jax.numpy as jnp
from jax.experimental import pallas as pl
from jax.experimental.pallas import tpu as pltpu

LANES = 128    # vreg lane width; hidden dims (16 / 32) are zero-padded to this
SUBLANE = 8    # f32 sublane granularity for the batch tile


def _round_up(n, m):
    return ((n + m - 1) // m) * m


def _pad2d(a, rows, cols):
    r, c = a.shape
    return jnp.pad(a, ((0, rows - r), (0, cols - c)))


def policy_net_kernel(x_ref, w1_ref, w23_ref, w4_ref, b123_ref, b4_ref,
                      out_ref):
    """One batch tile: 4x (matmul + bias + ReLU) then softmax over actions."""
    x = x_ref[...]                 # (bt, obs_dim)
    b123 = b123_ref[...]           # (3, 128) f32, VMEM-resident

    # fc1..fc4 with ReLU after every layer (faithful to the PyTorch module).
    # Hidden dims are zero-padded to 128; padded columns stay exactly 0
    # through ReLU, so the result is bit-exact w.r.t. the unpadded network.
    h = jnp.maximum(
        jnp.dot(x, w1_ref[...], preferred_element_type=jnp.float32)
        + b123[0:1, :], 0.0)
    h = jnp.maximum(
        jnp.dot(h, w23_ref[0], preferred_element_type=jnp.float32)
        + b123[1:2, :], 0.0)
    h = jnp.maximum(
        jnp.dot(h, w23_ref[1], preferred_element_type=jnp.float32)
        + b123[2:3, :], 0.0)
    logits = jnp.maximum(
        jnp.dot(h, w4_ref[...], preferred_element_type=jnp.float32)
        + b4_ref[...], 0.0)        # (bt, action_dim); ReLU kept as in the module

    # Softmax over the (unpadded) action columns — no lane mask needed.
    m = jnp.max(logits, axis=-1, keepdims=True)
    e = jnp.exp(logits - m)
    denom = jnp.sum(e, axis=-1, keepdims=True)
    # Exact reciprocal so rows sum to 1 for categorical sampling / log-probs.
    out_ref[...] = e * pl.reciprocal(denom, approx=False)


def policy_net_forward(x, params, *, block_b=4096):
    """Pallas forward pass. Returns softmax probs of shape (B, action_dim)."""
    (w1, b1), (w2, b2), (w3, b3), (w4, b4) = params
    B, obs_dim = x.shape
    action_dim = w4.shape[1]

    # Pad only the hidden feature dims (16/32) to 128 lanes; obs/action dims
    # are left at their true sizes so input/output HBM traffic stays minimal.
    w1p = _pad2d(w1, obs_dim, LANES).astype(jnp.float32)      # (obs, 128)
    w23 = jnp.stack([_pad2d(w2, LANES, LANES),                # (2, 128, 128)
                     _pad2d(w3, LANES, LANES)]).astype(jnp.float32)
    w4p = _pad2d(w4, LANES, action_dim).astype(jnp.float32)   # (128, act)
    b123 = jnp.concatenate(                                   # (3, 128)
        [_pad2d(b, 1, LANES) for b in (b1, b2, b3)], axis=0).astype(jnp.float32)
    b4p = b4.reshape(1, action_dim).astype(jnp.float32)       # (1, act)
    xf = x.astype(jnp.float32)

    # Batch tile: large to amortize per-step pipeline overhead, but capped at
    # ceil(B/2) so the grid has >= 2 steps whenever possible (v7x megacore).
    bt = max(SUBLANE, min(_round_up(block_b, SUBLANE),
                          _round_up(pl.cdiv(B, 2), SUBLANE)))
    bp = _round_up(B, bt)
    xp = xf if bp == B else jnp.pad(xf, ((0, bp - B), (0, 0)))
    grid = (bp // bt,)

    flops = 2 * bp * (obs_dim * LANES + 2 * LANES * LANES + LANES * action_dim)
    bytes_accessed = 4 * (xp.size + bp * action_dim
                          + w1p.size + w23.size + w4p.size
                          + b123.size + b4p.size)
    cost = pl.CostEstimate(flops=flops,
                           transcendentals=bp * action_dim,
                           bytes_accessed=bytes_accessed)

    out_padded = pl.pallas_call(
        policy_net_kernel,
        out_shape=jax.ShapeDtypeStruct((bp, action_dim), jnp.float32),
        grid=grid,
        in_specs=[
            pl.BlockSpec((bt, obs_dim), lambda i: (i, 0)),       # x tile
            pl.BlockSpec((obs_dim, LANES), lambda i: (0, 0)),    # w1 (resident)
            pl.BlockSpec((2, LANES, LANES), lambda i: (0, 0, 0)),# w2/w3
            pl.BlockSpec((LANES, action_dim), lambda i: (0, 0)), # w4
            pl.BlockSpec((3, LANES), lambda i: (0, 0)),          # b1/b2/b3
            pl.BlockSpec((1, action_dim), lambda i: (0, 0)),     # b4
        ],
        out_specs=pl.BlockSpec((bt, action_dim), lambda i: (i, 0)),
        compiler_params=pltpu.CompilerParams(
            dimension_semantics=("parallel",)),
        cost_estimate=cost,
    )(xp, w1p, w23, w4p, b123, b4p)

    return out_padded[:B] if bp != B else out_padded


def init_linear(key, in_features, out_features):
    """Mimics nn.Linear's U(-1/sqrt(fan_in), 1/sqrt(fan_in)) init.

    Weight stored transposed relative to PyTorch: (in, out). Bias: (1, out).
    """
    kw, kb = jax.random.split(key)
    bound = 1.0 / (in_features ** 0.5)
    w = jax.random.uniform(kw, (in_features, out_features), jnp.float32,
                           -bound, bound)
    b = jax.random.uniform(kb, (1, out_features), jnp.float32, -bound, bound)
    return w, b


def reference_forward(x, params):
    h = x
    for w, b in params:
        h = jnp.maximum(h @ w + b, 0.0)   # ReLU on every layer, incl. fc4
    m = jnp.max(h, axis=-1, keepdims=True)
    e = jnp.exp(h - m)
    return e / jnp.sum(e, axis=-1, keepdims=True)


if __name__ == "__main__":
    obs_dim, action_dim = 4, 2
    key = jax.random.PRNGKey(0)
    k_x, k_xl, k1, k2, k3, k4 = jax.random.split(key, 6)

    params = (
        init_linear(k1, obs_dim, 16),
        init_linear(k2, 16, 32),
        init_linear(k3, 32, 16),
        init_linear(k4, 16, action_dim),
    )

    # Small rollout-sized batch (single grid step).
    x_small = jax.random.normal(k_x, (8, obs_dim), jnp.float32)
    out_small = jax.block_until_ready(policy_net_forward(x_small, params))
    ref_small = reference_forward(x_small, params)
    assert out_small.shape == (8, action_dim)
    assert jnp.allclose(out_small, ref_small, atol=1e-4, rtol=1e-4)
    assert jnp.allclose(out_small.sum(-1), 1.0, atol=1e-5)

    # Larger, non-multiple-of-8 batch exercising the 2-step "parallel" grid
    # (bt = 504, bp = 1008) and the row-padding path.
    x_large = jax.random.normal(k_xl, (1000, obs_dim), jnp.float32)
    out_large = jax.block_until_ready(policy_net_forward(x_large, params))
    ref_large = reference_forward(x_large, params)
    assert out_large.shape == (1000, action_dim)
    assert jnp.allclose(out_large, ref_large, atol=1e-4, rtol=1e-4)
    assert jnp.allclose(out_large.sum(-1), 1.0, atol=1e-5)

    print("KERNEL_OK")
</pallas_src>

<mosaic_0001>
module attributes {stable_mosaic.version = 11 : i64} {
  func.func @policy_net_kernel(%arg0: i32, %arg1: memref<8x4xf32, #tpu.memory_space<vmem>>, %arg2: memref<4x128xf32, #tpu.memory_space<vmem>>, %arg3: memref<2x128x128xf32, #tpu.memory_space<vmem>>, %arg4: memref<128x2xf32, #tpu.memory_space<vmem>>, %arg5: memref<3x128xf32, #tpu.memory_space<vmem>>, %arg6: memref<1x2xf32, #tpu.memory_space<vmem>>, %arg7: memref<8x2xf32, #tpu.memory_space<vmem>>) attributes {dimension_semantics = [#tpu.dimension_semantics<parallel>], iteration_bounds = array<i64: 1>, scalar_prefetch = 0 : i64, scratch_operands = 0 : i64, tpu.core_type = #tpu.core_type<tc>, window_params = [{transform_indices = @transform_0, window_bounds = array<i64: 8, 4>}, {pipeline_mode = #tpu.pipeline_mode<synchronous>, transform_indices = @transform_1, window_bounds = array<i64: 4, 128>}, {pipeline_mode = #tpu.pipeline_mode<synchronous>, transform_indices = @transform_2, window_bounds = array<i64: 2, 128, 128>}, {pipeline_mode = #tpu.pipeline_mode<synchronous>, transform_indices = @transform_3, window_bounds = array<i64: 128, 2>}, {pipeline_mode = #tpu.pipeline_mode<synchronous>, transform_indices = @transform_4, window_bounds = array<i64: 3, 128>}, {pipeline_mode = #tpu.pipeline_mode<synchronous>, transform_indices = @transform_5, window_bounds = array<i64: 1, 2>}, {transform_indices = @transform_6, window_bounds = array<i64: 8, 2>}]} {
    %c0 = arith.constant 0 : index
    %c0_0 = arith.constant 0 : index
    %0 = vector.load %arg1[%c0, %c0_0] : memref<8x4xf32, #tpu.memory_space<vmem>>, vector<8x4xf32>
    %c0_1 = arith.constant 0 : index
    %c0_2 = arith.constant 0 : index
    %1 = vector.load %arg5[%c0_1, %c0_2] : memref<3x128xf32, #tpu.memory_space<vmem>>, vector<3x128xf32>
    %c0_3 = arith.constant 0 : index
    %c0_4 = arith.constant 0 : index
    %2 = vector.load %arg2[%c0_3, %c0_4] : memref<4x128xf32, #tpu.memory_space<vmem>>, vector<4x128xf32>
    %cst = arith.constant dense<0.000000e+00> : vector<8x128xf32>
    %3 = tpu.matmul %0, %2, %cst {dimension_numbers = #tpu.dot_dimension_numbers<[1], [0], [0], [1], [0, 0, 1, 1], [], []>} : vector<8x4xf32>, vector<4x128xf32>, vector<8x128xf32> -> vector<8x128xf32>
    %4 = vector.extract_strided_slice %1 {offsets = [0, 0], sizes = [1, 128], strides = [1, 1]} : vector<3x128xf32> to vector<1x128xf32>
    %5 = vector.broadcast %4 : vector<1x128xf32> to vector<8x128xf32>
    %6 = arith.addf %3, %5 : vector<8x128xf32>
    %cst_5 = arith.constant 0.000000e+00 : f32
    %7 = vector.broadcast %cst_5 : f32 to vector<8x128xf32>
    %8 = arith.maximumf %6, %7 : vector<8x128xf32>
    %c0_6 = arith.constant 0 : index
    %c0_7 = arith.constant 0 : index
    %c0_8 = arith.constant 0 : index
    %9 = vector.load %arg3[%c0_6, %c0_7, %c0_8] : memref<2x128x128xf32, #tpu.memory_space<vmem>>, vector<1x128x128xf32>
    %10 = vector.shape_cast %9 : vector<1x128x128xf32> to vector<128x128xf32>
    %cst_9 = arith.constant dense<0.000000e+00> : vector<8x128xf32>
    %11 = tpu.matmul %8, %10, %cst_9 {dimension_numbers = #tpu.dot_dimension_numbers<[1], [0], [0], [1], [0, 0, 1, 1], [], []>} : vector<8x128xf32>, vector<128x128xf32>, vector<8x128xf32> -> vector<8x128xf32>
    %12 = vector.extract_strided_slice %1 {offsets = [1, 0], sizes = [1, 128], strides = [1, 1]} : vector<3x128xf32> to vector<1x128xf32>
    %13 = vector.broadcast %12 : vector<1x128xf32> to vector<8x128xf32>
    %14 = arith.addf %11, %13 : vector<8x128xf32>
    %cst_10 = arith.constant 0.000000e+00 : f32
    %15 = vector.broadcast %cst_10 : f32 to vector<8x128xf32>
    %16 = arith.maximumf %14, %15 : vector<8x128xf32>
    %c1 = arith.constant 1 : index
    %c0_11 = arith.constant 0 : index
    %c0_12 = arith.constant 0 : index
    %17 = vector.load %arg3[%c1, %c0_11, %c0_12] : memref<2x128x128xf32, #tpu.memory_space<vmem>>, vector<1x128x128xf32>
    %18 = vector.shape_cast %17 : vector<1x128x128xf32> to vector<128x128xf32>
    %cst_13 = arith.constant dense<0.000000e+00> : vector<8x128xf32>
    %19 = tpu.matmul %16, %18, %cst_13 {dimension_numbers = #tpu.dot_dimension_numbers<[1], [0], [0], [1], [0, 0, 1, 1], [], []>} : vector<8x128xf32>, vector<128x128xf32>, vector<8x128xf32> -> vector<8x128xf32>
    %20 = vector.extract_strided_slice %1 {offsets = [2, 0], sizes = [1, 128], strides = [1, 1]} : vector<3x128xf32> to vector<1x128xf32>
    %21 = vector.broadcast %20 : vector<1x128xf32> to vector<8x128xf32>
    %22 = arith.addf %19, %21 : vector<8x128xf32>
    %cst_14 = arith.constant 0.000000e+00 : f32
    %23 = vector.broadcast %cst_14 : f32 to vector<8x128xf32>
    %24 = arith.maximumf %22, %23 : vector<8x128xf32>
    %c0_15 = arith.constant 0 : index
    %c0_16 = arith.constant 0 : index
    %25 = vector.load %arg4[%c0_15, %c0_16] : memref<128x2xf32, #tpu.memory_space<vmem>>, vector<128x2xf32>
    %cst_17 = arith.constant dense<0.000000e+00> : vector<8x2xf32>
    %26 = tpu.matmul %24, %25, %cst_17 {dimension_numbers = #tpu.dot_dimension_numbers<[1], [0], [0], [1], [0, 0, 1, 1], [], []>} : vector<8x128xf32>, vector<128x2xf32>, vector<8x2xf32> -> vector<8x2xf32>
    %c0_18 = arith.constant 0 : index
    %c0_19 = arith.constant 0 : index
    %27 = vector.load %arg6[%c0_18, %c0_19] : memref<1x2xf32, #tpu.memory_space<vmem>>, vector<1x2xf32>
    %28 = vector.broadcast %27 : vector<1x2xf32> to vector<8x2xf32>
    %29 = arith.addf %26, %28 : vector<8x2xf32>
    %cst_20 = arith.constant 0.000000e+00 : f32
    %30 = vector.broadcast %cst_20 : f32 to vector<8x2xf32>
    %31 = arith.maximumf %29, %30 : vector<8x2xf32>
    %cst_21 = arith.constant dense<0xFF800000> : vector<8xf32>
    %32 = vector.multi_reduction <maximumf>, %31, %cst_21 [1] : vector<8x2xf32> to vector<8xf32>
    %33 = vector.shape_cast %32 : vector<8xf32> to vector<8x1xf32>
    %34 = vector.broadcast %33 : vector<8x1xf32> to vector<8x2xf32>
    %35 = arith.subf %31, %34 : vector<8x2xf32>
    %36 = math.exp %35 : vector<8x2xf32>
    %cst_22 = arith.constant dense<0.000000e+00> : vector<8xf32>
    %37 = vector.multi_reduction <add>, %36, %cst_22 [1] : vector<8x2xf32> to vector<8xf32>
    %38 = vector.shape_cast %37 : vector<8xf32> to vector<8x1xf32>
    %39 = tpu.reciprocal %38 : vector<8x1xf32> -> vector<8x1xf32>
    %40 = vector.broadcast %39 : vector<8x1xf32> to vector<8x2xf32>
    %41 = arith.mulf %36, %40 : vector<8x2xf32>
    %c0_23 = arith.constant 0 : index
    %c0_24 = arith.constant 0 : index
    %42 = vector.load %arg7[%c0_23, %c0_24] : memref<8x2xf32, #tpu.memory_space<vmem>>, vector<8x2xf32>
    tpu.vector_store %arg7[%c0_23, %c0_24], %41 {strides = array<i32>} : memref<8x2xf32, #tpu.memory_space<vmem>>, vector<8x2xf32>,
    return
  }
  func.func @transform_0(%arg0: i32) -> (i32, i32) {
    %c0_i32 = arith.constant 0 : i32
    %c0_i32_0 = arith.constant 0 : i32
    return %arg0, %c0_i32 : i32, i32
  }
  func.func @transform_1(%arg0: i32) -> (i32, i32) {
    %c0_i32 = arith.constant 0 : i32
    %c0_i32_0 = arith.constant 0 : i32
    %c0_i32_1 = arith.constant 0 : i32
    return %c0_i32, %c0_i32_0 : i32, i32
  }
  func.func @transform_2(%arg0: i32) -> (i32, i32, i32) {
    %c0_i32 = arith.constant 0 : i32
    %c0_i32_0 = arith.constant 0 : i32
    %c0_i32_1 = arith.constant 0 : i32
    %c0_i32_2 = arith.constant 0 : i32
    return %c0_i32, %c0_i32_0, %c0_i32_1 : i32, i32, i32
  }
  func.func @transform_3(%arg0: i32) -> (i32, i32) {
    %c0_i32 = arith.constant 0 : i32
    %c0_i32_0 = arith.constant 0 : i32
    %c0_i32_1 = arith.constant 0 : i32
    return %c0_i32, %c0_i32_0 : i32, i32
  }
  func.func @transform_4(%arg0: i32) -> (i32, i32) {
    %c0_i32 = arith.constant 0 : i32
    %c0_i32_0 = arith.constant 0 : i32
    %c0_i32_1 = arith.constant 0 : i32
    return %c0_i32, %c0_i32_0 : i32, i32
  }
  func.func @transform_5(%arg0: i32) -> (i32, i32) {
    %c0_i32 = arith.constant 0 : i32
    %c0_i32_0 = arith.constant 0 : i32
    %c0_i32_1 = arith.constant 0 : i32
    return %c0_i32, %c0_i32_0 : i32, i32
  }
  func.func @transform_6(%arg0: i32) -> (i32, i32) {
    %c0_i32 = arith.constant 0 : i32
    %c0_i32_0 = arith.constant 0 : i32
    return %arg0, %c0_i32 : i32, i32
  }
}

</mosaic_0001>

<llo_original>
// kernel: tpu_custom_call.1
$region0: #{tpu_custom_call.1}
  #allocation0 [shape = 'u32[]', space=smem, size = 0x4, offset = 0x4, fixed_abs, tag = 'smem constant byte address 0x4 - core index']
  #allocation1 [shape = 'u32[144,128]{1,0:T(1,128)}', space=vmem, size = 0x12000, scoped, tag = 'internal scratch']
  %s0 = inlined_call_operand.vmem [shape: f32[8,4], index: 0, kind: input, shape index: {}]
  %s1 = inlined_call_operand.vmem [shape: f32[4,128], index: 1, kind: input, shape index: {}]
  %s2 = inlined_call_operand.hbm [shape: f32[2,128,128], index: 2, kind: input, shape index: {}]
  %s3 = inlined_call_operand.vmem [shape: f32[128,2], index: 3, kind: input, shape index: {}]
  %s4 = inlined_call_operand.vmem [shape: f32[3,128], index: 4, kind: input, shape index: {}]
  %s5 = inlined_call_operand.vmem [shape: f32[1,2], index: 5, kind: input, shape index: {}]
  %s6 = inlined_call_operand.vmem [shape: f32[8,2], index: 6, kind: output, shape index: {}]
  %s7 = sld [smem:[#allocation0]]
  $region38: #{tpu_custom_call.1} parent=0
    _
  %s9 = ssub.s32 1, %s7
  %s10 = scalar_select 0, %s9, %s7
  $region1: #{tpu_custom_call.1} parent=0
    #allocation2 [shape = 'u8[131072]{0}', space=vmem, size = 0x20000, scoped, tag = 'input window, operand 2, single buffered']
    #allocation3 [shape = 's32[1]{0}', space=sflag, size = 0x4, scoped, tag = 'scoped memory for tpu_custom_call.1']
    %11 = vsyncpa [#allocation3], 0
    // Predicated region
    $region2: #{tpu_custom_call.1} parent=1 // pred_check
      _
    $region3: #{tpu_custom_call.1} parent=1 // pred_check_branch
      %13 = sbr.rel (0) target = $region5
    $region4: #{tpu_custom_call.1} parent=1 // pred_region
      _
    $region5: #{tpu_custom_call.1} parent=1 // pred_fallthru
      _
    // Predicated region
    $region6: #{tpu_custom_call.1} parent=1 // pred_check
      _
    $region7: #{tpu_custom_call.1} parent=1 // pred_check_branch
      %15 = sbr.rel (0) target = $region9
    $region8: #{tpu_custom_call.1} parent=1 // pred_region
      _
    $region9: #{tpu_custom_call.1} parent=1 // pred_fallthru
      _
    // Predicated region
    $region10: #{tpu_custom_call.1} parent=1 // pred_check
      _
    $region11: #{tpu_custom_call.1} parent=1 // pred_check_branch
      %17 = sbr.rel (0) target = $region13
    $region12: #{tpu_custom_call.1} parent=1 // pred_region
      %s19 = ssub.s32 4096, 4096
      %20 = vsyncadd [#allocation3], %s19
      %s21 = sshll.u32 [#allocation2], 4
      %s22 = int_to_ptr.vmem [resolvable:$true] %s21
      %27 = dma.hbm_to_vmem [thread:$0]  %s2, 4096, %s22, [#allocation3], 128, 128, 8
    $region13: #{tpu_custom_call.1} parent=1 // pred_fallthru
      _
    // Predicated region
    $region14: #{tpu_custom_call.1} parent=1 // pred_check
      _
    $region15: #{tpu_custom_call.1} parent=1 // pred_check_branch
      %29 = sbr.rel (0) target = $region17
    $region16: #{tpu_custom_call.1} parent=1 // pred_region
      _
    $region17: #{tpu_custom_call.1} parent=1 // pred_fallthru
      _
    // Predicated region
    $region18: #{tpu_custom_call.1} parent=1 // pred_check
      _
    $region19: #{tpu_custom_call.1} parent=1 // pred_check_branch
      %31 = sbr.rel (0) target = $region21
    $region20: #{tpu_custom_call.1} parent=1 // pred_region
      _
    $region21: #{tpu_custom_call.1} parent=1 // pred_fallthru
      _
    // Predicated region
    $region22: #{tpu_custom_call.1} parent=1 // pred_check
      _
    $region23: #{tpu_custom_call.1} parent=1 // pred_check_branch
      %33 = sbr.rel (0) target = $region25
    $region24: #{tpu_custom_call.1} parent=1 // pred_region
      _
    $region25: #{tpu_custom_call.1} parent=1 // pred_fallthru
      _
    // Predicated region
    $region26: #{tpu_custom_call.1} parent=1 // pred_check
      _
    $region27: #{tpu_custom_call.1} parent=1 // pred_check_branch
      %35 = sbr.rel (0) target = $region29
    $region28: #{tpu_custom_call.1} parent=1 // pred_region
      %36 = dma.done [#allocation3], 4096
    $region29: #{tpu_custom_call.1} parent=1 // pred_fallthru
      _
    %v37 = vld [vmem:[%s0] sm:$0xff]
    %v38 = vld [vmem:[%s4] sm:$0x7]
    %v39 = vld [vmem:[%s1] sm:$0xf]
    %v40 = vlaneseq
    %v41 = vshrl.u32 %v40, 7
    %v42 = vsub.s32 0, %v41
    %v43 = vrot.slane %v38, %v42
    %vm44 = vcmask 31744
    %v46 = vsel %vm44, %v37, 0
    %vm48 = vcmask 1043456
    %v50 = vsel %vm48, %v39, 0
    %52 = vmatprep.subr.mxu0 0.0
    %53 = vmatpush1.msra.mxu0 %v50
    %54 = vmatprep.subr.mxu0 0.0
    %55 = vmatpush1.msra.mxu0 0.0
    %56 = vmatprep.subr.mxu0 0.0
    %57 = vmatpush1.msra.mxu0 0.0
    %58 = vmatprep.subr.mxu0 0.0
    %59 = vmatpush1.msra.mxu0 0.0
    %60 = vmatprep.subr.mxu0 0.0
    %61 = vmatpush1.msra.mxu0 0.0
    %62 = vmatprep.subr.mxu0 0.0
    %63 = vmatpush1.msra.mxu0 0.0
    %64 = vmatprep.subr.mxu0 0.0
    %65 = vmatpush1.msra.mxu0 0.0
    %66 = vmatprep.subr.mxu0 0.0
    %67 = vmatpush1.msra.mxu0 0.0
    %68 = vmatprep.subr.mxu0 0.0
    %69 = vmatpush1.msra.mxu0 0.0
    %70 = vmatprep.subr.mxu0 0.0
    %71 = vmatpush1.msra.mxu0 0.0
    %72 = vmatprep.subr.mxu0 0.0
    %73 = vmatpush1.msra.mxu0 0.0
    %74 = vmatprep.subr.mxu0 0.0
    %75 = vmatpush1.msra.mxu0 0.0
    %76 = vmatprep.subr.mxu0 0.0
    %77 = vmatpush1.msra.mxu0 0.0
    %78 = vmatprep.subr.mxu0 0.0
    %79 = vmatpush1.msra.mxu0 0.0
    %80 = vmatprep.subr.mxu0 0.0
    %81 = vmatpush1.msra.mxu0 0.0
    %82 = vmatprep.subr.mxu0 0.0
    %83 = vmatpush1.msra.mxu0 0.0
    %84 = vmatprep.subr.mxu0 0.0
    %85 = vmatpush1.msra.mxu0 0.0
    %86 = vmatprep.subr.mxu0 0.0
    %87 = vmatpush1.msra.mxu0 0.0
    %88 = vmatprep.subr.mxu0 0.0
    %89 = vmatpush1.msra.mxu0 0.0
    %90 = vmatprep.subr.mxu0 0.0
    %91 = vmatpush1.msra.mxu0 0.0
    %92 = vmatprep.subr.mxu0 0.0
    %93 = vmatpush1.msra.mxu0 0.0
    %94 = vmatprep.subr.mxu0 0.0
    %95 = vmatpush1.msra.mxu0 0.0
    %96 = vmatprep.subr.mxu0 0.0
    %97 = vmatpush1.msra.mxu0 0.0
    %98 = vmatprep.subr.mxu0 0.0
    %99 = vmatpush1.msra.mxu0 0.0
    %100 = vmatprep.subr.mxu0 0.0
    %101 = vmatpush1.msra.mxu0 0.0
    %102 = vmatprep.subr.mxu0 0.0
    %103 = vmatpush1.msra.mxu0 0.0
    %104 = vmatprep.subr.mxu0 0.0
    %105 = vmatpush1.msra.mxu0 0.0
    %106 = vmatprep.subr.mxu0 0.0
    %107 = vmatpush1.msra.mxu0 0.0
    %108 = vmatprep.subr.mxu0 0.0
    %109 = vmatpush1.msra.mxu0 0.0
    %110 = vmatprep.subr.mxu0 0.0
    %111 = vmatpush1.msra.mxu0 0.0
    %112 = vmatprep.subr.mxu0 0.0
    %113 = vmatpush1.msra.mxu0 0.0
    %114 = vmatprep.subr.mxu0 0.0
    %115 = vmatpush1.msra.mxu0 0.0
    %116 = vmatprep.mubr.f32.mxu0 0.0
    %117 = vmatmul.mubr.f32.gmra.mrb[0].mxu0 %v46
    %v118 = vpop.f32.mrb[0].mxu0
    %v119 = vadd.f32 %v43, %v118
    %v120 = vpop.f32.mrb[0].mxu0
    %121 = vdwg.mxu0
    %v122 = vmax.f32 %v119, 0.0
    %v123 = vld [vmem:[#allocation2] sm:$0xff]
    %v124 = vld [vmem:[#allocation2 + $0x8] sm:$0xff]
    %v125 = vld [vmem:[#allocation2 + $0x10] sm:$0xff]
    %v126 = vld [vmem:[#allocation2 + $0x18] sm:$0xff]
    %v127 = vld [vmem:[#allocation2 + $0x20] sm:$0xff]
    %v128 = vld [vmem:[#allocation2 + $0x28] sm:$0xff]
    %v129 = vld [vmem:[#allocation2 + $0x30] sm:$0xff]
    %v130 = vld [vmem:[#allocation2 + $0x38] sm:$0xff]
    %v131 = vld [vmem:[#allocation2 + $0x40] sm:$0xff]
    %v132 = vld [vmem:[#allocation2 + $0x48] sm:$0xff]
    %v133 = vld [vmem:[#allocation2 + $0x50] sm:$0xff]
    %v134 = vld [vmem:[#allocation2 + $0x58] sm:$0xff]
    %v135 = vld [vmem:[#allocation2 + $0x60] sm:$0xff]
    %v136 = vld [vmem:[#allocation2 + $0x68] sm:$0xff]
    %v137 = vld [vmem:[#allocation2 + $0x70] sm:$0xff]
    %v138 = vld [vmem:[#allocation2 + $0x78] sm:$0xff]
    %v139 = vlaneseq
    %v140 = vshrl.u32 %v139, 7
    %v141 = vsub.s32 1, %v140
    %v142 = vrot.slane %v38, %v141
    %143 = vmatprep.subr.mxu0 0.0
    %144 = vmatpush1.msra.mxu0 %v123
    %145 = vmatprep.subr.mxu0 0.0
    %146 = vmatpush1.msra.mxu0 %v124
    %147 = vmatprep.subr.mxu0 0.0
    %148 = vmatpush1.msra.mxu0 %v125
    %149 = vmatprep.subr.mxu0 0.0
    %150 = vmatpush1.msra.mxu0 %v126
    %151 = vmatprep.subr.mxu0 0.0
    %152 = vmatpush1.msra.mxu0 %v127
    %153 = vmatprep.subr.mxu0 0.0
    %154 = vmatpush1.msra.mxu0 %v128
    %155 = vmatprep.subr.mxu0 0.0
    %156 = vmatpush1.msra.mxu0 %v129
    %157 = vmatprep.subr.mxu0 0.0
    %158 = vmatpush1.msra.mxu0 %v130
    %159 = vmatprep.subr.mxu0 0.0
    %160 = vmatpush1.msra.mxu0 %v131
    %161 = vmatprep.subr.mxu0 0.0
    %162 = vmatpush1.msra.mxu0 %v132
    %163 = vmatprep.subr.mxu0 0.0
    %164 = vmatpush1.msra.mxu0 %v133
    %165 = vmatprep.subr.mxu0 0.0
    %166 = vmatpush1.msra.mxu0 %v134
    %167 = vmatprep.subr.mxu0 0.0
    %168 = vmatpush1.msra.mxu0 %v135
    %169 = vmatprep.subr.mxu0 0.0
    %170 = vmatpush1.msra.mxu0 %v136
    %171 = vmatprep.subr.mxu0 0.0
    %172 = vmatpush1.msra.mxu0 %v137
    %173 = vmatprep.subr.mxu0 0.0
    %174 = vmatpush1.msra.mxu0 %v138
    %175 = vmatprep.subr.mxu0 0.0
    %176 = vmatpush1.msra.mxu0 0.0
    %177 = vmatprep.subr.mxu0 0.0
    %178 = vmatpush1.msra.mxu0 0.0
    %179 = vmatprep.subr.mxu0 0.0
    %180 = vmatpush1.msra.mxu0 0.0
    %181 = vmatprep.subr.mxu0 0.0
    %182 = vmatpush1.msra.mxu0 0.0
    %183 = vmatprep.subr.mxu0 0.0
    %184 = vmatpush1.msra.mxu0 0.0
    %185 = vmatprep.subr.mxu0 0.0
    %186 = vmatpush1.msra.mxu0 0.0
    %187 = vmatprep.subr.mxu0 0.0
    %188 = vmatpush1.msra.mxu0 0.0
    %189 = vmatprep.subr.mxu0 0.0
    %190 = vmatpush1.msra.mxu0 0.0
    %191 = vmatprep.subr.mxu0 0.0
    %192 = vmatpush1.msra.mxu0 0.0
    %193 = vmatprep.subr.mxu0 0.0
    %194 = vmatpush1.msra.mxu0 0.0
    %195 = vmatprep.subr.mxu0 0.0
    %196 = vmatpush1.msra.mxu0 0.0
    %197 = vmatprep.subr.mxu0 0.0
    %198 = vmatpush1.msra.mxu0 0.0
    %199 = vmatprep.subr.mxu0 0.0
    %200 = vmatpush1.msra.mxu0 0.0
    %201 = vmatprep.subr.mxu0 0.0
    %202 = vmatpush1.msra.mxu0 0.0
    %203 = vmatprep.subr.mxu0 0.0
    %204 = vmatpush1.msra.mxu0 0.0
    %205 = vmatprep.subr.mxu0 0.0
    %206 = vmatpush1.msra.mxu0 0.0
    %207 = vmatprep.mubr.f32.mxu0 0.0
    %208 = vmatmul.mubr.f32.gmra.mrb[0].mxu0 %v122
    %v209 = vpop.f32.mrb[0].mxu0
    %v210 = vadd.f32 %v142, %v209
    %v211 = vpop.f32.mrb[0].mxu0
    %212 = vdwg.mxu0
    %v213 = vmax.f32 %v210, 0.0
    %s214 = scalar_lea.vmem [#allocation2], 128
    %v215 = vld [vmem:[%s214] sm:$0xff]
    %v216 = vld [vmem:[%s214 + $0x8] sm:$0xff]
    %v217 = vld [vmem:[%s214 + $0x10] sm:$0xff]
    %v218 = vld [vmem:[%s214 + $0x18] sm:$0xff]
    %v219 = vld [vmem:[%s214 + $0x20] sm:$0xff]
    %v220 = vld [vmem:[%s214 + $0x28] sm:$0xff]
    %v221 = vld [vmem:[%s214 + $0x30] sm:$0xff]
    %v222 = vld [vmem:[%s214 + $0x38] sm:$0xff]
    %v223 = vld [vmem:[%s214 + $0x40] sm:$0xff]
    %v224 = vld [vmem:[%s214 + $0x48] sm:$0xff]
    %v225 = vld [vmem:[%s214 + $0x50] sm:$0xff]
    %v226 = vld [vmem:[%s214 + $0x58] sm:$0xff]
    %v227 = vld [vmem:[%s214 + $0x60] sm:$0xff]
    %v228 = vld [vmem:[%s214 + $0x68] sm:$0xff]
    %v229 = vld [vmem:[%s214 + $0x70] sm:$0xff]
    %v230 = vld [vmem:[%s214 + $0x78] sm:$0xff]
    %v231 = vlaneseq
    %v232 = vshrl.u32 %v231, 7
    %v233 = vsub.s32 2, %v232
    %v234 = vrot.slane %v38, %v233
    %235 = vmatprep.subr.mxu0 0.0
    %236 = vmatpush1.msra.mxu0 %v215
    %237 = vmatprep.subr.mxu0 0.0
    %238 = vmatpush1.msra.mxu0 %v216
    %239 = vmatprep.subr.mxu0 0.0
    %240 = vmatpush1.msra.mxu0 %v217
    %241 = vmatprep.subr.mxu0 0.0
    %242 = vmatpush1.msra.mxu0 %v218
    %243 = vmatprep.subr.mxu0 0.0
    %244 = vmatpush1.msra.mxu0 %v219
    %245 = vmatprep.subr.mxu0 0.0
    %246 = vmatpush1.msra.mxu0 %v220
    %247 = vmatprep.subr.mxu0 0.0
    %248 = vmatpush1.msra.mxu0 %v221
    %249 = vmatprep.subr.mxu0 0.0
    %250 = vmatpush1.msra.mxu0 %v222
    %251 = vmatprep.subr.mxu0 0.0
    %252 = vmatpush1.msra.mxu0 %v223
    %253 = vmatprep.subr.mxu0 0.0
    %254 = vmatpush1.msra.mxu0 %v224
    %255 = vmatprep.subr.mxu0 0.0
    %256 = vmatpush1.msra.mxu0 %v225
    %257 = vmatprep.subr.mxu0 0.0
    %258 = vmatpush1.msra.mxu0 %v226
    %259 = vmatprep.subr.mxu0 0.0
    %260 = vmatpush1.msra.mxu0 %v227
    %261 = vmatprep.subr.mxu0 0.0
    %262 = vmatpush1.msra.mxu0 %v228
    %263 = vmatprep.subr.mxu0 0.0
    %264 = vmatpush1.msra.mxu0 %v229
    %265 = vmatprep.subr.mxu0 0.0
    %266 = vmatpush1.msra.mxu0 %v230
    %267 = vmatprep.subr.mxu0 0.0
    %268 = vmatpush1.msra.mxu0 0.0
    %269 = vmatprep.subr.mxu0 0.0
    %270 = vmatpush1.msra.mxu0 0.0
    %271 = vmatprep.subr.mxu0 0.0
    %272 = vmatpush1.msra.mxu0 0.0
    %273 = vmatprep.subr.mxu0 0.0
    %274 = vmatpush1.msra.mxu0 0.0
    %275 = vmatprep.subr.mxu0 0.0
    %276 = vmatpush1.msra.mxu0 0.0
    %277 = vmatprep.subr.mxu0 0.0
    %278 = vmatpush1.msra.mxu0 0.0
    %279 = vmatprep.subr.mxu0 0.0
    %280 = vmatpush1.msra.mxu0 0.0
    %281 = vmatprep.subr.mxu0 0.0
    %282 = vmatpush1.msra.mxu0 0.0
    %283 = vmatprep.subr.mxu0 0.0
    %284 = vmatpush1.msra.mxu0 0.0
    %285 = vmatprep.subr.mxu0 0.0
    %286 = vmatpush1.msra.mxu0 0.0
    %287 = vmatprep.subr.mxu0 0.0
    %288 = vmatpush1.msra.mxu0 0.0
    %289 = vmatprep.subr.mxu0 0.0
    %290 = vmatpush1.msra.mxu0 0.0
    %291 = vmatprep.subr.mxu0 0.0
    %292 = vmatpush1.msra.mxu0 0.0
    %293 = vmatprep.subr.mxu0 0.0
    %294 = vmatpush1.msra.mxu0 0.0
    %295 = vmatprep.subr.mxu0 0.0
    %296 = vmatpush1.msra.mxu0 0.0
    %297 = vmatprep.subr.mxu0 0.0
    %298 = vmatpush1.msra.mxu0 0.0
    %299 = vmatprep.mubr.f32.mxu0 0.0
    %300 = vmatmul.mubr.f32.gmra.mrb[0].mxu0 %v213
    %v301 = vpop.f32.mrb[0].mxu0
    %v302 = vadd.f32 %v234, %v301
    %v303 = vpop.f32.mrb[0].mxu0
    %304 = vdwg.mxu0
    %v305 = vmax.f32 %v302, 0.0
    %v306 = vld [vmem:[%s3] sm:$0xff]
    %v307 = vld [vmem:[%s3 + $0x8] sm:$0xff]
    %v308 = vld [vmem:[%s3 + $0x10] sm:$0xff]
    %v309 = vld [vmem:[%s3 + $0x18] sm:$0xff]
    %v310 = vld [vmem:[%s3 + $0x20] sm:$0xff]
    %v311 = vld [vmem:[%s3 + $0x28] sm:$0xff]
    %v312 = vld [vmem:[%s3 + $0x30] sm:$0xff]
    %v313 = vld [vmem:[%s3 + $0x38] sm:$0xff]
    %v314 = vld [vmem:[%s3 + $0x40] sm:$0xff]
    %v315 = vld [vmem:[%s3 + $0x48] sm:$0xff]
    %v316 = vld [vmem:[%s3 + $0x50] sm:$0xff]
    %v317 = vld [vmem:[%s3 + $0x58] sm:$0xff]
    %v318 = vld [vmem:[%s3 + $0x60] sm:$0xff]
    %v319 = vld [vmem:[%s3 + $0x68] sm:$0xff]
    %v320 = vld [vmem:[%s3 + $0x70] sm:$0xff]
    %v321 = vld [vmem:[%s3 + $0x78] sm:$0xff]
    %v322 = vld [vmem:[%s5] sm:$0x1]
    %v324 = vlaneseq
    %v325 = vshrl.u32 %v324, 7
    %v326 = vsub.s32 0, %v325
    %v327 = vrot.slane %v322, %v326
    %329 = vmatprep.subr.mxu0 0.0
    %330 = vmatpush1.msra.mxu0 %v306
    %331 = vmatprep.subr.mxu0 0.0
    %332 = vmatpush1.msra.mxu0 %v307
    %333 = vmatprep.subr.mxu0 0.0
    %334 = vmatpush1.msra.mxu0 %v308
    %335 = vmatprep.subr.mxu0 0.0
    %336 = vmatpush1.msra.mxu0 %v309
    %337 = vmatprep.subr.mxu0 0.0
    %338 = vmatpush1.msra.mxu0 %v310
    %339 = vmatprep.subr.mxu0 0.0
    %340 = vmatpush1.msra.mxu0 %v311
    %341 = vmatprep.subr.mxu0 0.0
    %342 = vmatpush1.msra.mxu0 %v312
    %343 = vmatprep.subr.mxu0 0.0
    %344 = vmatpush1.msra.mxu0 %v313
    %345 = vmatprep.subr.mxu0 0.0
    %346 = vmatpush1.msra.mxu0 %v314
    %347 = vmatprep.subr.mxu0 0.0
    %348 = vmatpush1.msra.mxu0 %v315
    %349 = vmatprep.subr.mxu0 0.0
    %350 = vmatpush1.msra.mxu0 %v316
    %351 = vmatprep.subr.mxu0 0.0
    %352 = vmatpush1.msra.mxu0 %v317
    %353 = vmatprep.subr.mxu0 0.0
    %354 = vmatpush1.msra.mxu0 %v318
    %355 = vmatprep.subr.mxu0 0.0
    %356 = vmatpush1.msra.mxu0 %v319
    %357 = vmatprep.subr.mxu0 0.0
    %358 = vmatpush1.msra.mxu0 %v320
    %359 = vmatprep.subr.mxu0 0.0
    %360 = vmatpush1.msra.mxu0 %v321
    %361 = vmatprep.subr.mxu0 0.0
    %362 = vmatpush1.msra.mxu0 0.0
    %363 = vmatprep.subr.mxu0 0.0
    %364 = vmatpush1.msra.mxu0 0.0
    %365 = vmatprep.subr.mxu0 0.0
    %366 = vmatpush1.msra.mxu0 0.0
    %367 = vmatprep.subr.mxu0 0.0
    %368 = vmatpush1.msra.mxu0 0.0
    %369 = vmatprep.subr.mxu0 0.0
    %370 = vmatpush1.msra.mxu0 0.0
    %371 = vmatprep.subr.mxu0 0.0
    %372 = vmatpush1.msra.mxu0 0.0
    %373 = vmatprep.subr.mxu0 0.0
    %374 = vmatpush1.msra.mxu0 0.0
    %375 = vmatprep.subr.mxu0 0.0
    %376 = vmatpush1.msra.mxu0 0.0
    %377 = vmatprep.subr.mxu0 0.0
    %378 = vmatpush1.msra.mxu0 0.0
    %379 = vmatprep.subr.mxu0 0.0
    %380 = vmatpush1.msra.mxu0 0.0
    %381 = vmatprep.subr.mxu0 0.0
    %382 = vmatpush1.msra.mxu0 0.0
    %383 = vmatprep.subr.mxu0 0.0
    %384 = vmatpush1.msra.mxu0 0.0
    %385 = vmatprep.subr.mxu0 0.0
    %386 = vmatpush1.msra.mxu0 0.0
    %387 = vmatprep.subr.mxu0 0.0
    %388 = vmatpush1.msra.mxu0 0.0
    %389 = vmatprep.subr.mxu0 0.0
    %390 = vmatpush1.msra.mxu0 0.0
    %391 = vmatprep.subr.mxu0 0.0
    %392 = vmatpush1.msra.mxu0 0.0
    %393 = vmatprep.mubr.f32.mxu0 0.0
    %394 = vmatmul.mubr.f32.gmra.mrb[0].mxu0 %v305
    %v395 = vpop.f32.mrb[0].mxu0
    %v396 = vadd.f32 %v327, %v395
    %v397 = vpop.f32.mrb[0].mxu0
    %398 = vdwg.mxu0
    %v399 = vmax.f32 %v396, 0.0
    %vm400 = vcmask 15360
    %v401 = vsel %vm400, %v399, -inf
    %402 = vmax.xlane.f32.xlu0 %v401
    %v403 = vpop.xlane.xlu0 %402
    %v404 = vsub.f32 %v399, %v403
    %v405 = vmul.f32 %v404, 1.442695
    %v406 = vpow.pop %v405
    %v407 = vsel %vm400, %v406, 0.0
    %408 = vadd.xlane.f32.xlu0 %v407
    %v409 = vpop.xlane.xlu0 %408
    %v410 = vrcp.pop %v409
    %v411 = vmul.f32 %v406, %v410
    %412 = vst.msk [vmem:[%s6] sm:$0xff] %vm400, %v411
    // Predicated region
    $region30: #{tpu_custom_call.1} parent=1 // pred_check
      _
    $region31: #{tpu_custom_call.1} parent=1 // pred_check_branch
      %414 = sbr.rel (0) target = $region33
    $region32: #{tpu_custom_call.1} parent=1 // pred_region
      _
    $region33: #{tpu_custom_call.1} parent=1 // pred_fallthru
      _
    // Predicated region
    $region34: #{tpu_custom_call.1} parent=1 // pred_check
      _
    $region35: #{tpu_custom_call.1} parent=1 // pred_check_branch
      %416 = sbr.rel (0) target = $region37
    $region36: #{tpu_custom_call.1} parent=1 // pred_region
      _
    $region37: #{tpu_custom_call.1} parent=1 // pred_fallthru
      _
    %417 = vsyncpa [#allocation3], 1

</llo_original>
